<compile_context>
chip_gen: v7x
topology: tpu7x:2x2x1
jax: 0.10.0
libtpu: 0.0.40
codegen_flags: <defaults>
</compile_context>

<pallas_src>
import functools

import jax
import jax.numpy as jnp
from jax.experimental import pallas as pl
from jax.experimental.pallas import tpu as pltpu

LANE = 128


def _round_up(n, m):
    return ((n + m - 1) // m) * m


def qnet_kernel(x_ref, w1_ref, b1_ref, w2_ref, b2_ref, o_ref):
    # Hidden layer: bf16 matmul on the MXU, f32 accumulate, bias + ReLU on VPU.
    x = x_ref[...].astype(jnp.bfloat16)
    h = jnp.dot(x, w1_ref[...], preferred_element_type=jnp.float32)
    h = jnp.maximum(h + b1_ref[...], 0.0)
    # Output layer: result is already at the unpadded (tb, out_size) width, so
    # the store + HBM writeback only move the logically needed bytes.
    y = jnp.dot(h.astype(jnp.bfloat16), w2_ref[...],
                preferred_element_type=jnp.float32)
    o_ref[...] = (y + b2_ref[...]).astype(o_ref.dtype)


def prepare_params(w1, b1, w2, b2, *, compute_dtype=jnp.bfloat16):
    """One-time repack of torch-layout params into kernel layout.

    w1: (hidden, in), b1: (hidden,), w2: (out, hidden), b2: (out,)
    Weights are pre-transposed and the hidden dim is zero-padded to a
    128-lane width (bf16); biases are (1, N) f32. The output dim is NOT
    padded -> minimal writeback and no wrapper-side column slice.
    """
    hidden, in_size = w1.shape
    out_size = w2.shape[0]
    hp = _round_up(hidden, LANE)

    w1p = jnp.zeros((in_size, hp), compute_dtype).at[:, :hidden].set(
        w1.T.astype(compute_dtype))
    b1p = jnp.zeros((1, hp), jnp.float32).at[:, :hidden].set(
        b1.astype(jnp.float32))
    # Padded hidden rows of W2 stay zero so padded hidden lanes cannot leak
    # into the outputs (they are already 0 after bias=0 + ReLU anyway).
    w2p = jnp.zeros((hp, out_size), compute_dtype).at[:hidden, :].set(
        w2.T.astype(compute_dtype))
    b2p = b2.astype(jnp.float32).reshape(1, out_size)
    return {"w1": w1p, "b1": b1p, "w2": w2p, "b2": b2p, "out_size": out_size}


def _pick_batch_tile(batch, block_batch):
    """Batch tile: multiple of 8, capped by block_batch, and (for batch > 8)
    small enough to yield >= 2 grid steps so the 'parallel' batch axis can be
    sharded across v7x's 2 TensorCores. On v5e prefer block_batch ~512-1024."""
    if batch <= 8:
        return batch                                   # single full-array block
    block_batch = max(8, (block_batch // 8) * 8)       # keep the (8,·) constraint
    half = _round_up(pl.cdiv(batch, 2), 8)             # guarantees >= 2 steps
    return min(block_batch, half)


@functools.partial(jax.jit,
                   static_argnames=("out_size", "block_batch", "out_dtype"))
def _forward_impl(x, w1p, b1p, w2p, b2p, *, out_size, block_batch, out_dtype):
    batch, in_size = x.shape
    hp = w1p.shape[1]

    tb = _pick_batch_tile(batch, block_batch)
    grid = (pl.cdiv(batch, tb),)   # ragged last block: Pallas masks the writeback

    isz = lambda a: jnp.dtype(a.dtype).itemsize
    cost = pl.CostEstimate(
        flops=2 * batch * (in_size * hp + hp * out_size),
        transcendentals=0,
        bytes_accessed=(batch * in_size * isz(x)
                        + w1p.size * isz(w1p) + w2p.size * isz(w2p)
                        + b1p.size * isz(b1p) + b2p.size * isz(b2p)
                        + batch * out_size * jnp.dtype(out_dtype).itemsize),
    )

    # Weights/biases: constant block index -> DMA'd once, VMEM-resident across
    # all grid steps; only x / out tiles stream (double-buffered by BlockSpec).
    resident = lambda a: pl.BlockSpec(a.shape, lambda i: (0, 0))

    return pl.pallas_call(
        qnet_kernel,
        out_shape=jax.ShapeDtypeStruct((batch, out_size), out_dtype),
        grid=grid,
        in_specs=[
            pl.BlockSpec((tb, in_size), lambda i: (i, 0)),   # x tiled over batch
            resident(w1p), resident(b1p),
            resident(w2p), resident(b2p),
        ],
        out_specs=pl.BlockSpec((tb, out_size), lambda i: (i, 0)),
        compiler_params=pltpu.CompilerParams(
            dimension_semantics=("parallel",)),              # v7x: 2 TCs on batch
        cost_estimate=cost,
    )(x, w1p, b1p, w2p, b2p)


def linear_qnet_forward(x, params, *, block_batch=1024, out_dtype=jnp.float32):
    """x: (B, input_size) -> (B, output_size). params from prepare_params().

    out_dtype=jnp.bfloat16 halves HBM writeback if the consumer tolerates it.
    """
    return _forward_impl(x, params["w1"], params["b1"], params["w2"],
                         params["b2"], out_size=params["out_size"],
                         block_batch=block_batch, out_dtype=out_dtype)


def init_params(key, input_size, hidden_size, output_size):
    """Deterministic init matching nn.Linear's U(-1/sqrt(fan_in), 1/sqrt(fan_in))."""
    k1, k2, k3, k4 = jax.random.split(key, 4)
    lim1 = 1.0 / jnp.sqrt(input_size)
    lim2 = 1.0 / jnp.sqrt(hidden_size)
    w1 = jax.random.uniform(k1, (hidden_size, input_size), jnp.float32, -lim1, lim1)
    b1 = jax.random.uniform(k2, (hidden_size,), jnp.float32, -lim1, lim1)
    w2 = jax.random.uniform(k3, (output_size, hidden_size), jnp.float32, -lim2, lim2)
    b2 = jax.random.uniform(k4, (output_size,), jnp.float32, -lim2, lim2)
    return w1, b1, w2, b2


if __name__ == "__main__":
    # Small shapes consistent with the Q-network MLP.
    batch, input_size, hidden_size, output_size = 4, 16, 32, 8

    key = jax.random.PRNGKey(0)
    kx, kp, kb = jax.random.split(key, 3)
    x = jax.random.normal(kx, (batch, input_size), jnp.float32)
    w1, b1, w2, b2 = init_params(kp, input_size, hidden_size, output_size)
    params = prepare_params(w1, b1, w2, b2)

    out = jax.block_until_ready(linear_qnet_forward(x, params))
    assert out.shape == (batch, output_size)
    assert out.dtype == jnp.float32

    # Reference that emulates the kernel's bf16-weight / f32-accumulate math.
    def ref_forward(xin):
        bf = lambda a: a.astype(jnp.bfloat16).astype(jnp.float32)
        h = jnp.maximum(bf(xin) @ bf(w1).T + b1, 0.0)
        return bf(h) @ bf(w2).T + b2

    ref = ref_forward(x)
    assert jnp.allclose(out, ref, atol=1e-2, rtol=1e-2)
    # Also stay close to the pure-f32 reference (bf16 weights, f32 accumulate).
    ref_f32 = jnp.maximum(x @ w1.T + b1, 0.0) @ w2.T + b2
    assert jnp.allclose(out, ref_f32, atol=5e-2, rtol=5e-2)

    # Mid-size batch: tile picker forces >= 2 grid steps (v7x megacore) and the
    # ragged final block is handled by Pallas masking (no wrapper pad/slice).
    xb = jax.random.normal(kb, (600, input_size), jnp.float32)
    out_b = jax.block_until_ready(linear_qnet_forward(xb, params, block_batch=256))
    assert out_b.shape == (600, output_size)
    assert jnp.allclose(out_b, ref_forward(xb), atol=1e-2, rtol=1e-2)

    # Optional bf16-output path (halved writeback) on the default tiling.
    out_bf16 = jax.block_until_ready(
        linear_qnet_forward(xb, params, out_dtype=jnp.bfloat16))
    assert out_bf16.shape == (600, output_size)
    assert out_bf16.dtype == jnp.bfloat16
    assert jnp.allclose(out_bf16.astype(jnp.float32), ref_forward(xb),
                        atol=5e-2, rtol=5e-2)

    print("KERNEL_OK")
</pallas_src>

<mosaic_0001>
module attributes {stable_mosaic.version = 11 : i64} {
  func.func @qnet_kernel(%arg0: i32, %arg1: memref<4x16xf32, #tpu.memory_space<vmem>>, %arg2: memref<16x128xbf16, #tpu.memory_space<vmem>>, %arg3: memref<1x128xf32, #tpu.memory_space<vmem>>, %arg4: memref<128x8xbf16, #tpu.memory_space<vmem>>, %arg5: memref<1x8xf32, #tpu.memory_space<vmem>>, %arg6: memref<4x8xf32, #tpu.memory_space<vmem>>) attributes {dimension_semantics = [#tpu.dimension_semantics<parallel>], iteration_bounds = array<i64: 1>, scalar_prefetch = 0 : i64, scratch_operands = 0 : i64, tpu.core_type = #tpu.core_type<tc>, window_params = [{transform_indices = @transform_0, window_bounds = array<i64: 4, 16>}, {pipeline_mode = #tpu.pipeline_mode<synchronous>, transform_indices = @transform_1, window_bounds = array<i64: 16, 128>}, {pipeline_mode = #tpu.pipeline_mode<synchronous>, transform_indices = @transform_2, window_bounds = array<i64: 1, 128>}, {pipeline_mode = #tpu.pipeline_mode<synchronous>, transform_indices = @transform_3, window_bounds = array<i64: 128, 8>}, {pipeline_mode = #tpu.pipeline_mode<synchronous>, transform_indices = @transform_4, window_bounds = array<i64: 1, 8>}, {transform_indices = @transform_5, window_bounds = array<i64: 4, 8>}]} {
    %c0 = arith.constant 0 : index
    %c0_0 = arith.constant 0 : index
    %0 = vector.load %arg1[%c0, %c0_0] : memref<4x16xf32, #tpu.memory_space<vmem>>, vector<4x16xf32>
    %1 = arith.truncf %0 : vector<4x16xf32> to vector<4x16xbf16>
    %c0_1 = arith.constant 0 : index
    %c0_2 = arith.constant 0 : index
    %2 = vector.load %arg2[%c0_1, %c0_2] : memref<16x128xbf16, #tpu.memory_space<vmem>>, vector<16x128xbf16>
    %cst = arith.constant dense<0.000000e+00> : vector<4x128xf32>
    %3 = tpu.matmul %1, %2, %cst {dimension_numbers = #tpu.dot_dimension_numbers<[1], [0], [0], [1], [0, 0, 1, 1], [], []>} : vector<4x16xbf16>, vector<16x128xbf16>, vector<4x128xf32> -> vector<4x128xf32>
    %c0_3 = arith.constant 0 : index
    %c0_4 = arith.constant 0 : index
    %4 = vector.load %arg3[%c0_3, %c0_4] : memref<1x128xf32, #tpu.memory_space<vmem>>, vector<1x128xf32>
    %5 = vector.broadcast %4 : vector<1x128xf32> to vector<4x128xf32>
    %6 = arith.addf %3, %5 : vector<4x128xf32>
    %cst_5 = arith.constant 0.000000e+00 : f32
    %7 = vector.broadcast %cst_5 : f32 to vector<4x128xf32>
    %8 = arith.maximumf %6, %7 : vector<4x128xf32>
    %9 = arith.truncf %8 : vector<4x128xf32> to vector<4x128xbf16>
    %c0_6 = arith.constant 0 : index
    %c0_7 = arith.constant 0 : index
    %10 = vector.load %arg4[%c0_6, %c0_7] : memref<128x8xbf16, #tpu.memory_space<vmem>>, vector<128x8xbf16>
    %cst_8 = arith.constant dense<0.000000e+00> : vector<4x8xf32>
    %11 = tpu.matmul %9, %10, %cst_8 {dimension_numbers = #tpu.dot_dimension_numbers<[1], [0], [0], [1], [0, 0, 1, 1], [], []>} : vector<4x128xbf16>, vector<128x8xbf16>, vector<4x8xf32> -> vector<4x8xf32>
    %c0_9 = arith.constant 0 : index
    %c0_10 = arith.constant 0 : index
    %12 = vector.load %arg5[%c0_9, %c0_10] : memref<1x8xf32, #tpu.memory_space<vmem>>, vector<1x8xf32>
    %13 = vector.broadcast %12 : vector<1x8xf32> to vector<4x8xf32>
    %14 = arith.addf %11, %13 : vector<4x8xf32>
    %c0_11 = arith.constant 0 : index
    %c0_12 = arith.constant 0 : index
    %15 = vector.load %arg6[%c0_11, %c0_12] : memref<4x8xf32, #tpu.memory_space<vmem>>, vector<4x8xf32>
    tpu.vector_store %arg6[%c0_11, %c0_12], %14 {strides = array<i32>} : memref<4x8xf32, #tpu.memory_space<vmem>>, vector<4x8xf32>,
    return
  }
  func.func @transform_0(%arg0: i32) -> (i32, i32) {
    %c0_i32 = arith.constant 0 : i32
    %c0_i32_0 = arith.constant 0 : i32
    return %arg0, %c0_i32 : i32, i32
  }
  func.func @transform_1(%arg0: i32) -> (i32, i32) {
    %c0_i32 = arith.constant 0 : i32
    %c0_i32_0 = arith.constant 0 : i32
    %c0_i32_1 = arith.constant 0 : i32
    return %c0_i32, %c0_i32_0 : i32, i32
  }
  func.func @transform_2(%arg0: i32) -> (i32, i32) {
    %c0_i32 = arith.constant 0 : i32
    %c0_i32_0 = arith.constant 0 : i32
    %c0_i32_1 = arith.constant 0 : i32
    return %c0_i32, %c0_i32_0 : i32, i32
  }
  func.func @transform_3(%arg0: i32) -> (i32, i32) {
    %c0_i32 = arith.constant 0 : i32
    %c0_i32_0 = arith.constant 0 : i32
    %c0_i32_1 = arith.constant 0 : i32
    return %c0_i32, %c0_i32_0 : i32, i32
  }
  func.func @transform_4(%arg0: i32) -> (i32, i32) {
    %c0_i32 = arith.constant 0 : i32
    %c0_i32_0 = arith.constant 0 : i32
    %c0_i32_1 = arith.constant 0 : i32
    return %c0_i32, %c0_i32_0 : i32, i32
  }
  func.func @transform_5(%arg0: i32) -> (i32, i32) {
    %c0_i32 = arith.constant 0 : i32
    %c0_i32_0 = arith.constant 0 : i32
    return %arg0, %c0_i32 : i32, i32
  }
}

</mosaic_0001>

<llo_original>
// kernel: _forward_impl.1
$region0: #{_forward_impl.1}
  #allocation0 [shape = 'u32[]', space=smem, size = 0x4, offset = 0x4, fixed_abs, tag = 'smem constant byte address 0x4 - core index']
  #allocation1 [shape = 'u32[144,128]{1,0:T(1,128)}', space=vmem, size = 0x12000, scoped, tag = 'internal scratch']
  %s0 = inlined_call_operand.vmem [shape: f32[4,16], index: 0, kind: input, shape index: {}]
  %s1 = inlined_call_operand.vmem [shape: bf16[16,128], index: 1, kind: input, shape index: {}]
  %s2 = inlined_call_operand.vmem [shape: f32[1,128], index: 2, kind: input, shape index: {}]
  %s3 = inlined_call_operand.vmem [shape: bf16[128,8], index: 3, kind: input, shape index: {}]
  %s4 = inlined_call_operand.vmem [shape: f32[1,8], index: 4, kind: input, shape index: {}]
  %s5 = inlined_call_operand.hbm [shape: f32[4,8], index: 5, kind: output, shape index: {}]
  %s6 = sld [smem:[#allocation0]]
  $region30: #{_forward_impl.1} parent=0
    _
  %s8 = ssub.s32 1, %s6
  %s9 = scalar_select 0, %s8, %s6
  $region1: #{_forward_impl.1} parent=0
    #allocation2 [shape = 'u8[2048]{0}', space=vmem, size = 0x800, scoped, tag = 'output window, operand 0, single buffered']
    #allocation3 [shape = 's32[1]{0}', space=sflag, size = 0x4, scoped, tag = 'scoped memory for _forward_impl.1']
    %10 = vsyncpa [#allocation3], 0
    // Predicated region
    $region2: #{_forward_impl.1} parent=1 // pred_check
      _
    $region3: #{_forward_impl.1} parent=1 // pred_check_branch
      %12 = sbr.rel (0) target = $region5
    $region4: #{_forward_impl.1} parent=1 // pred_region
      _
    $region5: #{_forward_impl.1} parent=1 // pred_fallthru
      _
    // Predicated region
    $region6: #{_forward_impl.1} parent=1 // pred_check
      _
    $region7: #{_forward_impl.1} parent=1 // pred_check_branch
      %14 = sbr.rel (0) target = $region9
    $region8: #{_forward_impl.1} parent=1 // pred_region
      _
    $region9: #{_forward_impl.1} parent=1 // pred_fallthru
      _
    // Predicated region
    $region10: #{_forward_impl.1} parent=1 // pred_check
      _
    $region11: #{_forward_impl.1} parent=1 // pred_check_branch
      %16 = sbr.rel (0) target = $region13
    $region12: #{_forward_impl.1} parent=1 // pred_region
      _
    $region13: #{_forward_impl.1} parent=1 // pred_fallthru
      _
    // Predicated region
    $region14: #{_forward_impl.1} parent=1 // pred_check
      _
    $region15: #{_forward_impl.1} parent=1 // pred_check_branch
      %18 = sbr.rel (0) target = $region17
    $region16: #{_forward_impl.1} parent=1 // pred_region
      _
    $region17: #{_forward_impl.1} parent=1 // pred_fallthru
      _
    // Predicated region
    $region18: #{_forward_impl.1} parent=1 // pred_check
      _
    $region19: #{_forward_impl.1} parent=1 // pred_check_branch
      %20 = sbr.rel (0) target = $region21
    $region20: #{_forward_impl.1} parent=1 // pred_region
      _
    $region21: #{_forward_impl.1} parent=1 // pred_fallthru
      _
    %v22 = vld [vmem:[%s0] sm:$0xf]
    %v23 = vpack.c.bf16 %v22, %v22
    %v24 = vld [vmem:[%s1] sm:$0xf]
    %v25 = vld [vmem:[%s1 + $0x4] sm:$0xf]
    %v26 = vld [vmem:[%s2] sm:$0x1]
    %v28 = vlaneseq
    %v29 = vshrl.u32 %v28, 7
    %v30 = vsub.s32 0, %v29
    %v31 = vrot.slane %v26, %v30
    %v35 = vunpack.c.l.b16 %v24
    %v36 = vunpack.c.l.b16 %v25
    %v37 = vpack.c.b16 %v36, %v35
    %vm39 = vcmask 130048
    %v41 = vsel %vm39, %v23, 0
    %43 = vmatprep.subr.bf16.mxu0 0
    %44 = vmatpush1.bf16.msra.mxu0 %v37
    %45 = vmatprep.subr.bf16.mxu0 0
    %46 = vmatpush1.bf16.msra.mxu0 0
    %47 = vmatprep.subr.bf16.mxu0 0
    %48 = vmatpush1.bf16.msra.mxu0 0
    %49 = vmatprep.subr.bf16.mxu0 0
    %50 = vmatpush1.bf16.msra.mxu0 0
    %51 = vmatprep.subr.bf16.mxu0 0
    %52 = vmatpush1.bf16.msra.mxu0 0
    %53 = vmatprep.subr.bf16.mxu0 0
    %54 = vmatpush1.bf16.msra.mxu0 0
    %55 = vmatprep.subr.bf16.mxu0 0
    %56 = vmatpush1.bf16.msra.mxu0 0
    %57 = vmatprep.subr.bf16.mxu0 0
    %58 = vmatpush1.bf16.msra.mxu0 0
    %59 = vmatprep.subr.bf16.mxu0 0
    %60 = vmatpush1.bf16.msra.mxu0 0
    %61 = vmatprep.subr.bf16.mxu0 0
    %62 = vmatpush1.bf16.msra.mxu0 0
    %63 = vmatprep.subr.bf16.mxu0 0
    %64 = vmatpush1.bf16.msra.mxu0 0
    %65 = vmatprep.subr.bf16.mxu0 0
    %66 = vmatpush1.bf16.msra.mxu0 0
    %67 = vmatprep.subr.bf16.mxu0 0
    %68 = vmatpush1.bf16.msra.mxu0 0
    %69 = vmatprep.subr.bf16.mxu0 0
    %70 = vmatpush1.bf16.msra.mxu0 0
    %71 = vmatprep.subr.bf16.mxu0 0
    %72 = vmatpush1.bf16.msra.mxu0 0
    %73 = vmatprep.subr.bf16.mxu0 0
    %74 = vmatpush1.bf16.msra.mxu0 0
    %75 = vmatprep.mubr.bf16.mxu0 0
    %76 = vmatmul.mubr.bf16.gmra.mrb[0].mxu0 %v41
    %v77 = vpop.f32.mrb[0].mxu0
    %v78 = vadd.f32 %v31, %v77
    %v79 = vpop.f32.mrb[0].mxu0
    %v80 = vpop.f32.mrb[0].mxu0
    %v81 = vpop.f32.mrb[0].mxu0
    %82 = vdwg.mxu0
    %v83 = vmax.f32 %v78, 0.0
    %v84 = vpack.c.bf16 %v83, %v83
    %v85 = vld [vmem:[%s3] sm:$0xf]
    %v86 = vld [vmem:[%s3 + $0x4] sm:$0xf]
    %v87 = vld [vmem:[%s3 + $0x8] sm:$0xf]
    %v88 = vld [vmem:[%s3 + $0xc] sm:$0xf]
    %v89 = vld [vmem:[%s3 + $0x10] sm:$0xf]
    %v90 = vld [vmem:[%s3 + $0x14] sm:$0xf]
    %v91 = vld [vmem:[%s3 + $0x18] sm:$0xf]
    %v92 = vld [vmem:[%s3 + $0x1c] sm:$0xf]
    %v93 = vld [vmem:[%s3 + $0x20] sm:$0xf]
    %v94 = vld [vmem:[%s3 + $0x24] sm:$0xf]
    %v95 = vld [vmem:[%s3 + $0x28] sm:$0xf]
    %v96 = vld [vmem:[%s3 + $0x2c] sm:$0xf]
    %v97 = vld [vmem:[%s3 + $0x30] sm:$0xf]
    %v98 = vld [vmem:[%s3 + $0x34] sm:$0xf]
    %v99 = vld [vmem:[%s3 + $0x38] sm:$0xf]
    %v100 = vld [vmem:[%s3 + $0x3c] sm:$0xf]
    %v101 = vld [vmem:[%s4] sm:$0x1]
    %v103 = vlaneseq
    %v104 = vshrl.u32 %v103, 7
    %v105 = vsub.s32 0, %v104
    %v106 = vrot.slane %v101, %v105
    %v124 = vunpack.c.l.b16 %v85
    %v125 = vunpack.c.l.b16 %v86
    %v126 = vunpack.c.l.b16 %v87
    %v127 = vunpack.c.l.b16 %v88
    %v128 = vunpack.c.l.b16 %v89
    %v129 = vunpack.c.l.b16 %v90
    %v130 = vunpack.c.l.b16 %v91
    %v131 = vunpack.c.l.b16 %v92
    %v132 = vunpack.c.l.b16 %v93
    %v133 = vunpack.c.l.b16 %v94
    %v134 = vunpack.c.l.b16 %v95
    %v135 = vunpack.c.l.b16 %v96
    %v136 = vunpack.c.l.b16 %v97
    %v137 = vunpack.c.l.b16 %v98
    %v138 = vunpack.c.l.b16 %v99
    %v139 = vunpack.c.l.b16 %v100
    %v140 = vpack.c.b16 %v125, %v124
    %v141 = vpack.c.b16 %v127, %v126
    %v142 = vpack.c.b16 %v129, %v128
    %v143 = vpack.c.b16 %v131, %v130
    %v144 = vpack.c.b16 %v133, %v132
    %v145 = vpack.c.b16 %v135, %v134
    %v146 = vpack.c.b16 %v137, %v136
    %v147 = vpack.c.b16 %v139, %v138
    %156 = vmatprep.subr.bf16.mxu0 0
    %157 = vmatpush1.bf16.msra.mxu0 %v140
    %158 = vmatprep.subr.bf16.mxu0 0
    %159 = vmatpush1.bf16.msra.mxu0 %v141
    %160 = vmatprep.subr.bf16.mxu0 0
    %161 = vmatpush1.bf16.msra.mxu0 %v142
    %162 = vmatprep.subr.bf16.mxu0 0
    %163 = vmatpush1.bf16.msra.mxu0 %v143
    %164 = vmatprep.subr.bf16.mxu0 0
    %165 = vmatpush1.bf16.msra.mxu0 %v144
    %166 = vmatprep.subr.bf16.mxu0 0
    %167 = vmatpush1.bf16.msra.mxu0 %v145
    %168 = vmatprep.subr.bf16.mxu0 0
    %169 = vmatpush1.bf16.msra.mxu0 %v146
    %170 = vmatprep.subr.bf16.mxu0 0
    %171 = vmatpush1.bf16.msra.mxu0 %v147
    %172 = vmatprep.subr.bf16.mxu0 0
    %173 = vmatpush1.bf16.msra.mxu0 0
    %174 = vmatprep.subr.bf16.mxu0 0
    %175 = vmatpush1.bf16.msra.mxu0 0
    %176 = vmatprep.subr.bf16.mxu0 0
    %177 = vmatpush1.bf16.msra.mxu0 0
    %178 = vmatprep.subr.bf16.mxu0 0
    %179 = vmatpush1.bf16.msra.mxu0 0
    %180 = vmatprep.subr.bf16.mxu0 0
    %181 = vmatpush1.bf16.msra.mxu0 0
    %182 = vmatprep.subr.bf16.mxu0 0
    %183 = vmatpush1.bf16.msra.mxu0 0
    %184 = vmatprep.subr.bf16.mxu0 0
    %185 = vmatpush1.bf16.msra.mxu0 0
    %186 = vmatprep.subr.bf16.mxu0 0
    %187 = vmatpush1.bf16.msra.mxu0 0
    %188 = vmatprep.mubr.bf16.mxu0 0
    %189 = vmatmul.mubr.bf16.gmra.mrb[0].mxu0 %v84
    %v190 = vpop.f32.mrb[0].mxu0
    %v191 = vadd.f32 %v106, %v190
    %v192 = vpop.f32.mrb[0].mxu0
    %v193 = vpop.f32.mrb[0].mxu0
    %v194 = vpop.f32.mrb[0].mxu0
    %195 = vdwg.mxu0
    %vm196 = vcmask 60416
    %197 = vst.msk [vmem:[#allocation2] sm:$0xf] %vm196, %v191
    // Predicated region
    $region22: #{_forward_impl.1} parent=1 // pred_check
      _
    $region23: #{_forward_impl.1} parent=1 // pred_check_branch
      %199 = sbr.rel (0) target = $region25
    $region24: #{_forward_impl.1} parent=1 // pred_region
      %s201 = ssub.s32 64, 64
      %202 = vsyncadd [#allocation3], %s201
      %s204 = sshll.u32 [#allocation2], 4
      %s205 = int_to_ptr.vmem [resolvable:$true] %s204
      %207 = dma.vmem_to_hbm [thread:$0]  %s205, 64, %s5, [#allocation3]
    $region25: #{_forward_impl.1} parent=1 // pred_fallthru
      _
    // Predicated region
    $region26: #{_forward_impl.1} parent=1 // pred_check
      _
    $region27: #{_forward_impl.1} parent=1 // pred_check_branch
      %209 = sbr.rel (0) target = $region29
    $region28: #{_forward_impl.1} parent=1 // pred_region
      %210 = dma.done [#allocation3], 64
    $region29: #{_forward_impl.1} parent=1 // pred_fallthru
      _
    %211 = vsyncpa [#allocation3], 1

</llo_original>
